<compile_context>
chip_gen: v7x
topology: tpu7x:2x2x1
jax: 0.10.0
libtpu: 0.0.40
codegen_flags: <defaults>
</compile_context>

<pallas_src>
import functools
import math

import jax
import jax.numpy as jnp
from jax.experimental import pallas as pl
from jax.experimental.pallas import tpu as pltpu


# ---------------------------------------------------------------------------
# Module buffer (replicates the torch pe buffer built in __init__).
# ---------------------------------------------------------------------------
def make_sine_pe(max_seq_length, d_model, dtype=jnp.float32):
    """pe[:, 0::2] = sin(pos * div_term), pe[:, 1::2] = cos(pos * div_term)."""
    assert d_model % 2 == 0, "d_model must be even (same limitation as torch original)"
    dim_index = jnp.arange(0, d_model, 2, dtype=jnp.float32)
    div_term = jnp.exp(-math.log(10000.0) * dim_index / d_model)
    positions = jnp.arange(0, max_seq_length, dtype=jnp.float32).reshape(-1, 1)
    terms = positions * div_term                                # (L, d_model // 2)
    pe = jnp.zeros((max_seq_length, d_model), jnp.float32)
    pe = pe.at[:, 0::2].set(jnp.sin(terms))
    pe = pe.at[:, 1::2].set(jnp.cos(terms))
    return pe.astype(dtype)


# ---------------------------------------------------------------------------
# Kernel: broadcast-add of the positional-encoding tile onto the activations.
# ---------------------------------------------------------------------------
def _sine_pe_add_kernel(x_ref, pe_ref, o_ref):
    # x_ref: (bn, bl); pe_ref: (1, bl) or (bn, bl). Eval-mode dropout = identity.
    o_ref[...] = x_ref[...] + pe_ref[...]


# ---------------------------------------------------------------------------
# Block-shape heuristics.
# ---------------------------------------------------------------------------
@functools.lru_cache(maxsize=1)
def _num_tensorcores():
    """Best-effort TensorCore-per-chip count (1 on v5e/v6e, 2 on v7x)."""
    try:
        info = pltpu.get_tpu_info()
        for attr in ("num_cores", "core_count", "num_tensorcores", "tensorcore_count"):
            n = getattr(info, attr, None)
            if isinstance(n, int) and 1 <= n <= 8:
                return n
    except Exception:
        pass
    try:
        kind = jax.devices()[0].device_kind.lower()
        if "v7" in kind:
            return 2
    except Exception:
        pass
    return 1


def _fold_factor(N, T, D, sub_rows):
    """If the batch is too small to fill the sublanes, fold a factor r of T into
    the row axis (x -> (N*r, (T//r)*D)) while keeping lanes a multiple of 128."""
    if N >= sub_rows or T <= 1:
        return 1
    for r in range(2, min(T, 64) + 1):
        if T % r == 0 and ((T // r) * D) % 128 == 0 and N * r >= sub_rows:
            return r
    return 1


def _row_block(R, sub_rows, row_cap=256):
    bn = (min(R, row_cap) // sub_rows) * sub_rows
    return bn if bn > 0 else R          # R < sub_rows -> take the full (small) dim


def _lane_block(F, bn, itemsize, target_block_bytes):
    cap = max(128, (target_block_bytes // (itemsize * max(bn, 1))) // 128 * 128)
    # F <= cap: full dim (always a legal block dim). Else: multiple-of-128 block,
    # ragged tail handled by Pallas masking.
    return F if F <= cap else cap


# ---------------------------------------------------------------------------
# Forward wrapper.
# ---------------------------------------------------------------------------
def sine_position_encoder_forward(x, pe, *, force_pallas=False,
                                  target_block_bytes=2 * 1024 * 1024):
    """x: (N, T, D); pe: (L, D) or (1, L, D) with L >= T. Returns x + pe[:T]."""
    N, T, D = x.shape
    if pe.ndim == 3:                     # accept the torch-style (1, L, D) buffer
        pe = pe[0]
    assert pe.shape[0] >= T, "pe buffer shorter than sequence length"
    assert pe.shape[1] == D, "pe feature dim mismatch"
    pe_t = pe[:T].astype(x.dtype)

    # Tiny inputs: pallas_call launch/pipeline overhead dwarfs a few-KiB DMA.
    if not force_pallas and x.size * x.dtype.itemsize < (1 << 20):
        return x + pe_t[None]

    itemsize = x.dtype.itemsize
    sub_rows = 8 * max(1, 4 // itemsize)          # f32: 8, bf16: 16, int8/fp8: 32

    r = _fold_factor(N, T, D, sub_rows)
    if r > 1:
        # Fold r time-chunks into the row axis; row g = n*r + q uses pe chunk q.
        R, F = N * r, (T // r) * D
        x2 = x.reshape(R, F)
        pe2 = jnp.tile(pe_t.reshape(r, F), (N, 1))     # (R, F); tiny, built once
        bn, pe_rows = R, R
    else:
        R, F = N, T * D
        x2 = x.reshape(R, F)
        pe2 = pe_t.reshape(1, F)                       # broadcast over batch in-kernel
        bn, pe_rows = _row_block(R, sub_rows), 1

    bl = _lane_block(F, bn, itemsize, target_block_bytes)

    # Only on multi-TensorCore chips (v7x): make sure both cores get work when
    # the grid would otherwise be a single block. Never split on v5e/v6e.
    num_tc = _num_tensorcores()
    if num_tc >= 2 and pl.cdiv(R, bn) * pl.cdiv(F, bl) < num_tc and bl >= 256:
        bl = max(128, (bl // 2) // 128 * 128)

    # Row axis innermost so the pe block index is constant across consecutive
    # grid steps (pe tile stays resident in VMEM).
    grid = (pl.cdiv(F, bl), pl.cdiv(R, bn))

    # Double-buffered x + out blocks plus the pe tile, with headroom; safe on
    # v5e (16 MiB scoped default) through v7x (64 MiB physical).
    needed = 2 * itemsize * (2 * bn * bl + pe_rows * bl)
    vmem_limit = int(min(max(2 * needed, 8 * 1024 * 1024), 32 * 1024 * 1024))

    out = pl.pallas_call(
        _sine_pe_add_kernel,
        grid=grid,
        in_specs=[
            pl.BlockSpec((bn, bl), lambda j, i: (i, j)),        # activations
            pl.BlockSpec((pe_rows, bl), lambda j, i: (0, j)),   # pe tile (resident)
        ],
        out_specs=pl.BlockSpec((bn, bl), lambda j, i: (i, j)),
        out_shape=jax.ShapeDtypeStruct((R, F), x.dtype),
        compiler_params=pltpu.CompilerParams(
            dimension_semantics=("parallel", "parallel"),
            vmem_limit_bytes=vmem_limit),
    )(x2, pe2)
    return out.reshape(N, T, D)


def reference_forward(x, pe):
    """Pure-JAX reference mirroring the PyTorch forward (eval mode)."""
    T = x.shape[1]
    return x + pe[None, :T, :].astype(x.dtype)


if __name__ == "__main__":
    # Shapes implied by the module: x is (N, t, d_model).
    d_model, p_dropout, max_seq_length = 32, 0.1, 64
    N, T = 2, 8

    key = jax.random.PRNGKey(0)
    x = jax.random.normal(key, (N, T, d_model), jnp.float32)
    pe = make_sine_pe(max_seq_length, d_model)            # module buffer (built at init)

    # Demo input is tiny (2 KiB) so force the Pallas path to actually exercise it.
    out = sine_position_encoder_forward(x, pe, force_pallas=True)
    out = jax.block_until_ready(out)
    ref = reference_forward(x, pe)
    assert out.shape == (N, T, d_model)
    assert jnp.allclose(out, ref, atol=1e-6, rtol=1e-6), float(jnp.max(jnp.abs(out - ref)))

    # Exercise the main (row-blocked + lane-blocked) path.
    pe_big = make_sine_pe(512, 128)
    x_big = jax.random.normal(jax.random.PRNGKey(0), (16, 256, 128), jnp.float32)
    o_big = jax.block_until_ready(sine_position_encoder_forward(x_big, pe_big))
    assert jnp.allclose(o_big, reference_forward(x_big, pe_big), atol=1e-6, rtol=1e-6)

    # Exercise the small-batch fold path (N < 8, T folded into the row axis).
    x_fold = jax.random.normal(jax.random.PRNGKey(0), (2, 64, 128), jnp.float32)
    o_fold = jax.block_until_ready(
        sine_position_encoder_forward(x_fold, pe_big, force_pallas=True))
    assert jnp.allclose(o_fold, reference_forward(x_fold, pe_big), atol=1e-6, rtol=1e-6)

    print("KERNEL_OK")
</pallas_src>

<mosaic_0001>
module attributes {stable_mosaic.version = 11 : i64} {
  func.func @_sine_pe_add_kernel(%arg0: i32, %arg1: i32, %arg2: memref<2x256xf32, #tpu.memory_space<vmem>>, %arg3: memref<1x256xf32, #tpu.memory_space<vmem>>, %arg4: memref<2x256xf32, #tpu.memory_space<vmem>>) attributes {dimension_semantics = [#tpu.dimension_semantics<parallel>, #tpu.dimension_semantics<parallel>], iteration_bounds = array<i64: 1, 1>, scalar_prefetch = 0 : i64, scratch_operands = 0 : i64, tpu.core_type = #tpu.core_type<tc>, window_params = [{transform_indices = @transform_0, window_bounds = array<i64: 2, 256>}, {transform_indices = @transform_1, window_bounds = array<i64: 1, 256>}, {transform_indices = @transform_2, window_bounds = array<i64: 2, 256>}]} {
    %c0 = arith.constant 0 : index
    %c0_0 = arith.constant 0 : index
    %0 = vector.load %arg2[%c0, %c0_0] : memref<2x256xf32, #tpu.memory_space<vmem>>, vector<2x256xf32>
    %c0_1 = arith.constant 0 : index
    %c0_2 = arith.constant 0 : index
    %1 = vector.load %arg3[%c0_1, %c0_2] : memref<1x256xf32, #tpu.memory_space<vmem>>, vector<1x256xf32>
    %2 = vector.broadcast %1 : vector<1x256xf32> to vector<2x256xf32>
    %3 = arith.addf %0, %2 : vector<2x256xf32>
    %c0_3 = arith.constant 0 : index
    %c0_4 = arith.constant 0 : index
    %4 = vector.load %arg4[%c0_3, %c0_4] : memref<2x256xf32, #tpu.memory_space<vmem>>, vector<2x256xf32>
    tpu.vector_store %arg4[%c0_3, %c0_4], %3 {strides = array<i32>} : memref<2x256xf32, #tpu.memory_space<vmem>>, vector<2x256xf32>,
    return
  }
  func.func @transform_0(%arg0: i32, %arg1: i32) -> (i32, i32) {
    %c0_i32 = arith.constant 0 : i32
    return %arg1, %arg0 : i32, i32
  }
  func.func @transform_1(%arg0: i32, %arg1: i32) -> (i32, i32) {
    %c0_i32 = arith.constant 0 : i32
    %c0_i32_0 = arith.constant 0 : i32
    return %c0_i32, %arg0 : i32, i32
  }
  func.func @transform_2(%arg0: i32, %arg1: i32) -> (i32, i32) {
    %c0_i32 = arith.constant 0 : i32
    return %arg1, %arg0 : i32, i32
  }
}

</mosaic_0001>

<llo_original>
// kernel: tpu_custom_call.1
$region0: #{tpu_custom_call.1}
  #allocation0 [shape = 'u32[]', space=smem, size = 0x4, offset = 0x4, fixed_abs, tag = 'smem constant byte address 0x4 - core index']
  #allocation1 [shape = 'u32[144,128]{1,0:T(1,128)}', space=vmem, size = 0x12000, scoped, tag = 'internal scratch']
  %s0 = inlined_call_operand.hbm [shape: f32[2,256], index: 0, kind: input, shape index: {}]
  %s1 = inlined_call_operand.vmem [shape: f32[1,256], index: 1, kind: input, shape index: {}]
  %s2 = inlined_call_operand.hbm [shape: f32[2,256], index: 2, kind: output, shape index: {}]
  %s3 = sld [smem:[#allocation0]]
  $region22: #{tpu_custom_call.1} parent=0
    _
  %s5 = ssub.s32 1, %s3
  %s6 = scalar_select 0, %s5, %s3
  $region1: #{tpu_custom_call.1} parent=0
    #allocation2 [shape = 'u8[2048]{0}', space=vmem, size = 0x800, scoped, tag = 'input window, operand 0, single buffered']
    #allocation3 [shape = 's32[1]{0}', space=sflag, size = 0x4, scoped, tag = 'scoped memory for tpu_custom_call.1']
    #allocation4 [shape = 's32[1]{0}', space=sflag, size = 0x4, scoped, tag = 'scoped memory for tpu_custom_call.1']
    #allocation5 [shape = 'u8[2048]{0}', space=vmem, size = 0x800, scoped, tag = 'output window, operand 0, single buffered']
    %7 = vsyncpa [#allocation3], 0
    %8 = vsyncpa [#allocation4], 0
    // Predicated region
    $region2: #{tpu_custom_call.1} parent=1 // pred_check
      _
    $region3: #{tpu_custom_call.1} parent=1 // pred_check_branch
      %10 = sbr.rel (0) target = $region5
    $region4: #{tpu_custom_call.1} parent=1 // pred_region
      %s12 = ssub.s32 64, 64
      %13 = vsyncadd [#allocation3], %s12
      %s15 = sshll.u32 [#allocation2], 4
      %s16 = int_to_ptr.vmem [resolvable:$true] %s15
      %18 = dma.hbm_to_vmem [thread:$0]  %s0, 64, %s16, [#allocation3]
    $region5: #{tpu_custom_call.1} parent=1 // pred_fallthru
      _
    // Predicated region
    $region6: #{tpu_custom_call.1} parent=1 // pred_check
      _
    $region7: #{tpu_custom_call.1} parent=1 // pred_check_branch
      %20 = sbr.rel (0) target = $region9
    $region8: #{tpu_custom_call.1} parent=1 // pred_region
      _
    $region9: #{tpu_custom_call.1} parent=1 // pred_fallthru
      _
    // Predicated region
    $region10: #{tpu_custom_call.1} parent=1 // pred_check
      _
    $region11: #{tpu_custom_call.1} parent=1 // pred_check_branch
      %22 = sbr.rel (0) target = $region13
    $region12: #{tpu_custom_call.1} parent=1 // pred_region
      %23 = dma.done [#allocation3], 64
    $region13: #{tpu_custom_call.1} parent=1 // pred_fallthru
      _
    %v24 = vld [vmem:[#allocation2] sm:$0xf]
    %v25 = vld [vmem:[%s1] sm:$0x3]
    %v27 = vlaneseq
    %v28 = vshrl.u32 %v27, 7
    %v29 = vsub.s32 0, %v28
    %v30 = vrot.slane %v25, %v29
    %v31 = vlaneseq
    %v32 = vshrl.u32 %v31, 7
    %v33 = vsub.s32 1, %v32
    %v34 = vrot.slane %v25, %v33
    %v35 = vcombine.low %v30, %v34
    %v37 = vunpack.c.l.s4 1983009808
    %v38 = vunpack.c.0.s8 %v37
    %v39 = vlaneseq
    %v40 = vshrl.u32 %v39, 7
    %v41 = vsub.s32 %v38, %v40
    %v42 = vrot.slane %v35, %v41
    %v44 = vadd.f32 %v24, %v42
    %45 = vst [vmem:[#allocation5] sm:$0xf] %v44
    // Predicated region
    $region14: #{tpu_custom_call.1} parent=1 // pred_check
      _
    $region15: #{tpu_custom_call.1} parent=1 // pred_check_branch
      %47 = sbr.rel (0) target = $region17
    $region16: #{tpu_custom_call.1} parent=1 // pred_region
      %s49 = ssub.s32 64, 64
      %50 = vsyncadd [#allocation4], %s49
      %s52 = sshll.u32 [#allocation5], 4
      %s53 = int_to_ptr.vmem [resolvable:$true] %s52
      %55 = dma.vmem_to_hbm [thread:$0]  %s53, 64, %s2, [#allocation4]
    $region17: #{tpu_custom_call.1} parent=1 // pred_fallthru
      _
    // Predicated region
    $region18: #{tpu_custom_call.1} parent=1 // pred_check
      _
    $region19: #{tpu_custom_call.1} parent=1 // pred_check_branch
      %57 = sbr.rel (0) target = $region21
    $region20: #{tpu_custom_call.1} parent=1 // pred_region
      %58 = dma.done [#allocation4], 64
    $region21: #{tpu_custom_call.1} parent=1 // pred_fallthru
      _
    %59 = vsyncpa [#allocation3], 1
    %60 = vsyncpa [#allocation4], 1

</llo_original>
